<compile_context>
chip_gen: v6e
topology: v6e:2x2x1
jax: 0.10.0
libtpu: 0.0.40
codegen_flags: <defaults>
</compile_context>

<pallas_src>
import jax
import jax.numpy as jnp
from jax.experimental import pallas as pl
from jax.experimental.pallas import tpu as pltpu


def _round_up(x, m):
    return ((x + m - 1) // m) * m


# ---------------------------------------------------------------------------
# Pallas kernels
# ---------------------------------------------------------------------------
def _pairwise_score_kernel(u_ref, pn_ref, out_ref):
    # u: (tb, D), pn: (2, tb, D) [pos, neg] -> out: (2, tb)  (lane-dense store)
    u = u_ref[...]                                   # (tb, D)
    pn = pn_ref[...]                                 # (2, tb, D)
    out_ref[...] = jnp.sum(u[None, :, :] * pn, axis=-1)  # (2, tb)


def _multi_items_kernel(u_ref, items_ref, out_ref):
    # u: (tb, D), items: (tb, K, D) -> out: (tb, K)
    # tb is kept modest (<=128) so the broadcast product (tb*K*D f32) stays well
    # under the 64-vreg budget.  For very large K, switch to a fori_loop over K.
    u = u_ref[...]
    it = items_ref[...]
    out_ref[...] = jnp.sum(u[:, None, :] * it, axis=-1)


def _ratings_kernel(u_ref, itT_ref, out_ref):
    # u: (tm, D) bf16, itT: (D, tn) bf16 (pre-transposed, lane-dense RHS)
    # -> out: (tm, tn) f32.  No in-kernel transpose; f32 accumulation on MXU.
    out_ref[...] = jnp.dot(
        u_ref[...], itT_ref[...], preferred_element_type=jnp.float32
    )


# ---------------------------------------------------------------------------
# pallas_call wrappers
# ---------------------------------------------------------------------------
def pairwise_scores(u_emb, pos_emb, neg_emb, *, tb=128):
    B, D = u_emb.shape
    tb = min(tb, _round_up(B, 8))
    b_pad = _round_up(B, tb)
    pad = ((0, b_pad - B), (0, 0))
    u = jnp.pad(u_emb, pad)
    pn = jnp.stack([jnp.pad(pos_emb, pad), jnp.pad(neg_emb, pad)])  # (2, b_pad, D)

    out = pl.pallas_call(
        _pairwise_score_kernel,
        out_shape=jax.ShapeDtypeStruct((2, b_pad), jnp.float32),
        grid=(b_pad // tb,),
        in_specs=[
            pl.BlockSpec((tb, D), lambda i: (i, 0)),
            pl.BlockSpec((2, tb, D), lambda i: (0, i, 0)),
        ],
        out_specs=pl.BlockSpec((2, tb), lambda i: (0, i)),
        compiler_params=pltpu.CompilerParams(
            dimension_semantics=("parallel",),
        ),
    )(u, pn)
    return out[0, :B], out[1, :B]


def multi_item_scores(u_emb, items_emb, *, tb=128):
    B, D = u_emb.shape
    _, K, _ = items_emb.shape
    tb = min(tb, _round_up(B, 8))
    b_pad = _round_up(B, tb)
    u = jnp.pad(u_emb, ((0, b_pad - B), (0, 0)))
    it = jnp.pad(items_emb, ((0, b_pad - B), (0, 0), (0, 0)))

    out = pl.pallas_call(
        _multi_items_kernel,
        out_shape=jax.ShapeDtypeStruct((b_pad, K), jnp.float32),
        grid=(b_pad // tb,),
        in_specs=[
            pl.BlockSpec((tb, D), lambda i: (i, 0)),
            pl.BlockSpec((tb, K, D), lambda i: (i, 0, 0)),
        ],
        out_specs=pl.BlockSpec((tb, K), lambda i: (i, 0)),
        compiler_params=pltpu.CompilerParams(
            dimension_semantics=("parallel",),
        ),
    )(u, it)
    return out[:B]


def all_item_scores(u_emb, item_table_T_bf16, *, tm=256, tn=2048):
    """u_emb: (Bu, D) f32/bf16; item_table_T_bf16: (D, N) bf16. Returns (Bu, N) f32."""
    Bu, D = u_emb.shape
    _, N = item_table_T_bf16.shape

    # Tile sizes: sublane-multiple rows, lane-dense (multiple-of-128) columns.
    # Sized so double-buffered tiles stay far below VMEM on v7x (64 MiB) as well
    # as v5e/v6e (128 MiB).  With D=32 the kernel is HBM-write-bound, so large
    # lane-dense output tiles are the main lever.
    tm = min(tm, _round_up(Bu, 8))
    tn = min(tn, _round_up(N, 128))
    bu_pad = _round_up(Bu, tm)
    n_pad = _round_up(N, tn)

    u = jnp.pad(u_emb, ((0, bu_pad - Bu), (0, 0))).astype(jnp.bfloat16)
    itT = jnp.pad(item_table_T_bf16, ((0, 0), (0, n_pad - N)))

    grid = (pl.cdiv(bu_pad, tm), pl.cdiv(n_pad, tn))

    # double-buffered: lhs + rhs (bf16) + out (f32) tiles, plus margin
    vmem_limit = int(2 * (tm * D * 2 + D * tn * 2 + tm * tn * 4) + (8 << 20))

    out = pl.pallas_call(
        _ratings_kernel,
        out_shape=jax.ShapeDtypeStruct((bu_pad, n_pad), jnp.float32),
        grid=grid,
        in_specs=[
            pl.BlockSpec((tm, D), lambda i, j: (i, 0)),
            pl.BlockSpec((D, tn), lambda i, j: (0, j)),
        ],
        out_specs=pl.BlockSpec((tm, tn), lambda i, j: (i, j)),
        compiler_params=pltpu.CompilerParams(
            dimension_semantics=("parallel", "parallel"),  # D fully contracted per tile
            vmem_limit_bytes=vmem_limit,
        ),
        cost_estimate=pl.CostEstimate(
            flops=2 * bu_pad * n_pad * D,
            transcendentals=0,
            bytes_accessed=2 * bu_pad * D + 2 * D * n_pad + 4 * bu_pad * n_pad,
        ),
    )(u, itT)
    return out[:Bu, :N]


# ---------------------------------------------------------------------------
# BaseRec (JAX / Pallas version)
# ---------------------------------------------------------------------------
class BaseRecPallas:
    def __init__(self, num_users, num_items, embed_dim, key):
        self.num_users = num_users
        self.num_items = num_items
        self.embed_dim = embed_dim
        # analogous to self.user_list / self.item_list buffers
        self.user_list = jnp.arange(num_users, dtype=jnp.int32)
        self.item_list = jnp.arange(num_items, dtype=jnp.int32)
        ku, ki = jax.random.split(key)
        self.user_emb = jax.random.normal(ku, (num_users, embed_dim), jnp.float32) * 0.1
        self.item_emb = jax.random.normal(ki, (num_items, embed_dim), jnp.float32) * 0.1
        # Pre-transposed bf16 item table for the ratings matmul: (D, N) so the
        # MXU RHS tile is lane-dense and no in-kernel transpose is needed.
        self.item_emb_T_bf16 = self.item_emb.T.astype(jnp.bfloat16)

    def forward(self, batch_user, batch_pos_item, batch_neg_item):
        u = self.user_emb[batch_user]          # (B, D)   gather: plain JAX glue
        p = self.item_emb[batch_pos_item]      # (B, D)
        n = self.item_emb[batch_neg_item]      # (B, D)
        return pairwise_scores(u, p, n)        # (B,), (B,)

    def forward_multi_items(self, batch_user, batch_items):
        u = self.user_emb[batch_user]          # (B, D)
        it = self.item_emb[batch_items]        # (B, K, D)
        return multi_item_scores(u, it)        # (B, K)

    def get_ratings(self, batch_user):
        u = self.user_emb[batch_user]          # (B, D)
        return all_item_scores(u, self.item_emb_T_bf16)        # (B, num_items)

    def get_all_ratings(self):
        return all_item_scores(self.user_emb, self.item_emb_T_bf16)  # (U, I)

    def get_all_embedding(self):
        return self.user_emb, self.item_emb


# ---------------------------------------------------------------------------
if __name__ == "__main__":
    key = jax.random.PRNGKey(0)
    k_model, k_u, k_p, k_n, k_mi = jax.random.split(key, 5)

    num_users, num_items, embed_dim = 64, 128, 32
    batch, k_items = 8, 4

    model = BaseRecPallas(num_users, num_items, embed_dim, k_model)

    batch_user = jax.random.randint(k_u, (batch,), 0, num_users)
    batch_pos = jax.random.randint(k_p, (batch,), 0, num_items)
    batch_neg = jax.random.randint(k_n, (batch,), 0, num_items)
    batch_items = jax.random.randint(k_mi, (batch, k_items), 0, num_items)

    pos_score, neg_score = model.forward(batch_user, batch_pos, batch_neg)
    multi_score = model.forward_multi_items(batch_user, batch_items)
    ratings = model.get_ratings(batch_user)
    all_ratings = model.get_all_ratings()

    jax.block_until_ready((pos_score, neg_score, multi_score, ratings, all_ratings))

    # correctness checks against plain-JAX references
    u = model.user_emb[batch_user]
    ref_pos = jnp.sum(u * model.item_emb[batch_pos], axis=-1)
    ref_neg = jnp.sum(u * model.item_emb[batch_neg], axis=-1)
    ref_multi = jnp.sum(u[:, None, :] * model.item_emb[batch_items], axis=-1)
    ref_ratings = u @ model.item_emb.T
    ref_all = model.user_emb @ model.item_emb.T

    assert pos_score.shape == (batch,) and neg_score.shape == (batch,)
    assert multi_score.shape == (batch, k_items)
    assert ratings.shape == (batch, num_items)
    assert all_ratings.shape == (num_users, num_items)

    assert jnp.allclose(pos_score, ref_pos, atol=1e-5)
    assert jnp.allclose(neg_score, ref_neg, atol=1e-5)
    assert jnp.allclose(multi_score, ref_multi, atol=1e-5)
    # ratings path uses bf16 inputs (f32 accumulation) -> looser tolerance
    assert jnp.allclose(ratings, ref_ratings, atol=5e-3)
    assert jnp.allclose(all_ratings, ref_all, atol=5e-3)

    print("KERNEL_OK")
</pallas_src>

<mosaic_0001>
module attributes {stable_mosaic.version = 11 : i64} {
  func.func @_pairwise_score_kernel(%arg0: i32, %arg1: memref<8x32xf32, #tpu.memory_space<vmem>>, %arg2: memref<2x8x32xf32, #tpu.memory_space<vmem>>, %arg3: memref<2x8xf32, #tpu.memory_space<vmem>>) attributes {dimension_semantics = [#tpu.dimension_semantics<parallel>], iteration_bounds = array<i64: 1>, scalar_prefetch = 0 : i64, scratch_operands = 0 : i64, tpu.core_type = #tpu.core_type<tc>, window_params = [{transform_indices = @transform_0, window_bounds = array<i64: 8, 32>}, {transform_indices = @transform_1, window_bounds = array<i64: 2, 8, 32>}, {transform_indices = @transform_2, window_bounds = array<i64: 2, 8>}]} {
    %c0 = arith.constant 0 : index
    %c0_0 = arith.constant 0 : index
    %0 = vector.load %arg1[%c0, %c0_0] : memref<8x32xf32, #tpu.memory_space<vmem>>, vector<8x32xf32>
    %c0_1 = arith.constant 0 : index
    %c0_2 = arith.constant 0 : index
    %c0_3 = arith.constant 0 : index
    %1 = vector.load %arg2[%c0_1, %c0_2, %c0_3] : memref<2x8x32xf32, #tpu.memory_space<vmem>>, vector<2x8x32xf32>
    %2 = vector.shape_cast %0 : vector<8x32xf32> to vector<1x8x32xf32>
    %3 = vector.broadcast %2 : vector<1x8x32xf32> to vector<2x8x32xf32>
    %4 = arith.mulf %3, %1 : vector<2x8x32xf32>
    %cst = arith.constant dense<0.000000e+00> : vector<2x8xf32>
    %5 = vector.multi_reduction <add>, %4, %cst [2] : vector<2x8x32xf32> to vector<2x8xf32>
    %c0_4 = arith.constant 0 : index
    %c0_5 = arith.constant 0 : index
    %6 = vector.load %arg3[%c0_4, %c0_5] : memref<2x8xf32, #tpu.memory_space<vmem>>, vector<2x8xf32>
    tpu.vector_store %arg3[%c0_4, %c0_5], %5 {strides = array<i32>} : memref<2x8xf32, #tpu.memory_space<vmem>>, vector<2x8xf32>,
    return
  }
  func.func @transform_0(%arg0: i32) -> (i32, i32) {
    %c0_i32 = arith.constant 0 : i32
    %c0_i32_0 = arith.constant 0 : i32
    return %arg0, %c0_i32 : i32, i32
  }
  func.func @transform_1(%arg0: i32) -> (i32, i32, i32) {
    %c0_i32 = arith.constant 0 : i32
    %c0_i32_0 = arith.constant 0 : i32
    %c0_i32_1 = arith.constant 0 : i32
    return %c0_i32, %arg0, %c0_i32_0 : i32, i32, i32
  }
  func.func @transform_2(%arg0: i32) -> (i32, i32) {
    %c0_i32 = arith.constant 0 : i32
    %c0_i32_0 = arith.constant 0 : i32
    return %c0_i32, %arg0 : i32, i32
  }
}

</mosaic_0001>

<llo_original>
// kernel: tpu_custom_call.1
$region0: #{tpu_custom_call.1}
  #allocation0 [shape = 'u32[]', space=smem, size = 0x4, offset = 0x4, fixed_abs, tag = 'smem constant byte address 0x4 - core index']
  #allocation1 [shape = 'u32[144,128]{1,0:T(1,128)}', space=vmem, size = 0x12000, scoped, tag = 'internal scratch']
  %s0 = inlined_call_operand.hbm [shape: f32[8,32], index: 0, kind: input, shape index: {}]
  %s1 = inlined_call_operand.hbm [shape: f32[2,8,32], index: 1, kind: input, shape index: {}]
  %s2 = inlined_call_operand.hbm [shape: f32[2,8], index: 2, kind: output, shape index: {}]
  %s3 = sld [smem:[#allocation0]]
  $region26: #{tpu_custom_call.1} parent=0
    _
  %s5 = ssub.s32 1, %s3
  %s6 = scalar_select 0, %s5, %s3
  $region1: #{tpu_custom_call.1} parent=0
    #allocation2 [shape = 'u8[4096]{0}', space=vmem, size = 0x1000, scoped, tag = 'input window, operand 0, single buffered']
    #allocation3 [shape = 's32[1]{0}', space=sflag, size = 0x4, scoped, tag = 'scoped memory for tpu_custom_call.1']
    #allocation4 [shape = 's32[1]{0}', space=sflag, size = 0x4, scoped, tag = 'scoped memory for tpu_custom_call.1']
    #allocation5 [shape = 'u8[8192]{0}', space=vmem, size = 0x2000, scoped, tag = 'input window, operand 1, single buffered']
    #allocation6 [shape = 's32[1]{0}', space=sflag, size = 0x4, scoped, tag = 'scoped memory for tpu_custom_call.1']
    #allocation7 [shape = 'u8[1024]{0}', space=vmem, size = 0x400, scoped, tag = 'output window, operand 0, single buffered']
    %7 = vsyncpa [#allocation3], 0
    %8 = vsyncpa [#allocation6], 0
    %9 = vsyncpa [#allocation4], 0
    // Predicated region
    $region2: #{tpu_custom_call.1} parent=1 // pred_check
      _
    $region3: #{tpu_custom_call.1} parent=1 // pred_check_branch
      %11 = sbr.rel (0) target = $region5
    $region4: #{tpu_custom_call.1} parent=1 // pred_region
      %s13 = ssub.s32 128, 128
      %14 = vsyncadd [#allocation3], %s13
      %s16 = sshll.u32 [#allocation2], 4
      %s17 = int_to_ptr.vmem [resolvable:$true] %s16
      %19 = dma.hbm_to_vmem [thread:$0]  %s0, 128, %s17, [#allocation3]
    $region5: #{tpu_custom_call.1} parent=1 // pred_fallthru
      _
    // Predicated region
    $region6: #{tpu_custom_call.1} parent=1 // pred_check
      _
    $region7: #{tpu_custom_call.1} parent=1 // pred_check_branch
      %21 = sbr.rel (0) target = $region9
    $region8: #{tpu_custom_call.1} parent=1 // pred_region
      %s23 = ssub.s32 256, 256
      %24 = vsyncadd [#allocation6], %s23
      %s25 = sshll.u32 [#allocation5], 4
      %s26 = int_to_ptr.vmem [resolvable:$true] %s25
      %31 = dma.hbm_to_vmem [thread:$0]  %s1, 256, %s26, [#allocation6], 128, 128, 8
    $region9: #{tpu_custom_call.1} parent=1 // pred_fallthru
      _
    // Predicated region
    $region10: #{tpu_custom_call.1} parent=1 // pred_check
      _
    $region11: #{tpu_custom_call.1} parent=1 // pred_check_branch
      %33 = sbr.rel (0) target = $region13
    $region12: #{tpu_custom_call.1} parent=1 // pred_region
      %34 = dma.done [#allocation3], 128
    $region13: #{tpu_custom_call.1} parent=1 // pred_fallthru
      _
    // Predicated region
    $region14: #{tpu_custom_call.1} parent=1 // pred_check
      _
    $region15: #{tpu_custom_call.1} parent=1 // pred_check_branch
      %36 = sbr.rel (0) target = $region17
    $region16: #{tpu_custom_call.1} parent=1 // pred_region
      %37 = dma.done [#allocation6], 256
    $region17: #{tpu_custom_call.1} parent=1 // pred_fallthru
      _
    %v38 = vld [vmem:[#allocation2] sm:$0xff]
    %v39 = vld [vmem:[#allocation5] sm:$0xff]
    %v40 = vld [vmem:[#allocation5 + $0x8] sm:$0xff]
    %v41 = vmul.f32 %v38, %v39
    %v42 = vmul.f32 %v38, %v40
    %vm43 = vcmask 261120
    %v44 = vsel %vm43, %v41, 0.0
    %45 = vadd.xlane.f32.xlu0 %v44
    %v46 = vpop.xlane.xlu0 %45
    %v47 = vsel %vm43, %v42, 0.0
    %48 = vadd.xlane.f32.xlu0 %v47
    %v49 = vpop.xlane.xlu0 %48
    %v52 = vlaneseq
    %v53 = vand.u32 %v52, 127
    %v54 = vlaneseq
    %v55 = vshrl.u32 %v54, 7
    %v56 = vsub.s32 %v53, %v55
    %v57 = vrot.slane %v46, %v56
    %v58 = vlaneseq
    %v59 = vshrl.u32 %v58, 7
    %v60 = vsub.s32 %v53, %v59
    %v61 = vrot.slane %v49, %v60
    %vm62 = vcmask 1041409
    %v63 = vsel %vm62, %v61, %v57
    %vm65 = vcmask 58368
    %66 = vst.msk [vmem:[#allocation7] sm:$0x3] %vm65, %v63
    // Predicated region
    $region18: #{tpu_custom_call.1} parent=1 // pred_check
      _
    $region19: #{tpu_custom_call.1} parent=1 // pred_check_branch
      %68 = sbr.rel (0) target = $region21
    $region20: #{tpu_custom_call.1} parent=1 // pred_region
      %s70 = ssub.s32 32, 32
      %71 = vsyncadd [#allocation4], %s70
      %s73 = sshll.u32 [#allocation7], 4
      %s74 = int_to_ptr.vmem [resolvable:$true] %s73
      %76 = dma.vmem_to_hbm [thread:$0]  %s74, 32, %s2, [#allocation4]
    $region21: #{tpu_custom_call.1} parent=1 // pred_fallthru
      _
    // Predicated region
    $region22: #{tpu_custom_call.1} parent=1 // pred_check
      _
    $region23: #{tpu_custom_call.1} parent=1 // pred_check_branch
      %78 = sbr.rel (0) target = $region25
    $region24: #{tpu_custom_call.1} parent=1 // pred_region
      %79 = dma.done [#allocation4], 32
    $region25: #{tpu_custom_call.1} parent=1 // pred_fallthru
      _
    %80 = vsyncpa [#allocation3], 1
    %81 = vsyncpa [#allocation6], 1
    %82 = vsyncpa [#allocation4], 1

</llo_original>
